<compile_context>
chip_gen: v5e
topology: v5e:2x2
jax: 0.10.0
libtpu: 0.0.40
codegen_flags: <defaults>
</compile_context>

<pallas_src>
import math
import functools

import jax
import jax.numpy as jnp
from jax.experimental import pallas as pl
from jax.experimental.pallas import tpu as pltpu


def _eca_kernel(x_ref, band_t_ref, w2_ref, b_ref, o_ref, *, bt, inv_hw):
    """One grid step processes BT batches.

    x_ref:      (BT, C, HW)  input block (caller dtype; fed to the MXU un-gated)
    band_t_ref: (C, C)       transposed banded ECA-conv matrix (f32), grid-invariant
    w2_ref:     (O, C)       1x1 conv weight (caller dtype), grid-invariant
    b_ref:      (O, 1)       1x1 conv bias, grid-invariant
    o_ref:      (BT, O, HW)  output block (caller dtype)
    """
    x = x_ref[...]                                           # single load; feeds pool + MXU

    # Global average pool over the spatial (lane) axis; f32 accumulation, no f32 tile copy.
    pooled = jnp.sum(x, axis=2, dtype=jnp.float32) * inv_hw  # (BT, C), inv_hw is py float

    # ECA 1-D channel conv as a banded matmul: conv = pooled @ band^T.
    # TODO(synk): for production C (>=256) replace the dense (C,C) band with k pltpu.roll
    # taps + edge masks to free the O(C^2) VMEM operand; at small C the dense band is
    # noise and is the most robust lowering.
    conv = jnp.dot(pooled, band_t_ref[...], preferred_element_type=jnp.float32)  # (BT, C)

    # Numerically stable sigmoid (exp runs on the EUP; no inf intermediate).
    e = jnp.exp(-jnp.abs(conv))
    attn = jnp.where(conv >= 0.0, 1.0 / (1.0 + e), e / (1.0 + e))                # (BT, C)

    w2f = w2_ref[...].astype(jnp.float32)                    # (O, C)
    bias = b_ref[...].astype(jnp.float32)                    # (O, 1)

    # Fold attention into the weight (f32 scale, cast once) and do one lane-dense MXU
    # matmul per batch: out[i] = (w2 * attn[i]) @ x[i] + bias.
    for i in range(bt):                                      # bt is small & static
        w2s = (w2f * attn[i:i + 1, :]).astype(x.dtype)       # (O, C)
        out = jnp.dot(w2s, x[i], preferred_element_type=jnp.float32) + bias      # (O, HW)
        o_ref[i] = out.astype(o_ref.dtype)


def _pick_batch_tile(B, C, O, HW, itemsize, budget_bytes):
    # Largest divisor of B that (a) leaves >= 2 grid steps when B >= 2 (so both v7x
    # TensorCores get work under dimension_semantics=("parallel",)), and (b) keeps the
    # double-buffered x + out blocks under the VMEM budget.
    max_bt = max(1, B // 2) if B >= 2 else 1
    for cand in range(min(max_bt, 8), 0, -1):
        if B % cand:
            continue
        if 2 * cand * HW * (C + O) * itemsize <= budget_bytes:
            return cand
    return 1


def ecanet_pallas(x_nchw, w1d, w2, b2, *, k, batch_tile=None):
    B, C, H, W = x_nchw.shape
    O = w2.shape[0]
    HW = H * W
    dtype = x_nchw.dtype
    itemsize = jnp.dtype(dtype).itemsize

    # VMEM budget safe on all generations (v7x: 64 MiB physical, 32 MiB scoped default).
    budget = 24 * 1024 * 1024
    if batch_tile is None:
        batch_tile = _pick_batch_tile(B, C, O, HW, itemsize, budget)
    BT = batch_tile
    assert B % BT == 0, "batch_tile must divide B"
    # TODO(synk): if even BT=1 blocks exceed the budget (very large HW), add a spatial grid
    # axis with a two-pass pool/apply structure and pad HW to a multiple of 128 so stores
    # stay lane-dense.

    # Build the grid-invariant banded ECA-conv matrix ONCE in the wrapper.
    # conv[c] = sum_j w1d[j] * pooled[c + j - pad]  (PyTorch Conv1d cross-correlation);
    # we pass band^T so the kernel computes conv = pooled @ band_t with no in-kernel
    # transpose.  band_t[c', c] = w1d[j] where c' - c == j - pad.
    pad = (k - 1) // 2
    row = jnp.arange(C)[:, None]
    col = jnp.arange(C)[None, :]
    band_t = jnp.zeros((C, C), jnp.float32)
    for j in range(k):
        band_t = band_t + jnp.where(row - col == (j - pad),
                                    w1d[j].astype(jnp.float32), 0.0)

    x = x_nchw.reshape(B, C, HW)              # keep caller dtype; no upcast
    b_col = b2.reshape(O, 1)

    kernel = functools.partial(_eca_kernel, bt=BT, inv_hw=1.0 / float(HW))

    # Explicit VMEM limit from the actual footprint (+ headroom), capped at v7x physical.
    block_bytes = 2 * BT * HW * (C + O) * itemsize            # double-buffered x + out
    const_bytes = 2 * (C * C * 4 + O * C * itemsize + O * 4)  # band^T, w2, bias
    vmem_limit = min(64 * 1024 * 1024,
                     max(32 * 1024 * 1024, 2 * (block_bytes + const_bytes)))

    out = pl.pallas_call(
        kernel,
        out_shape=jax.ShapeDtypeStruct((B, O, HW), dtype),
        grid_spec=pltpu.PrefetchScalarGridSpec(
            num_scalar_prefetch=0,
            grid=(B // BT,),
            in_specs=[
                pl.BlockSpec((BT, C, HW), lambda b: (b, 0, 0)),   # x block
                # Grid-invariant operands (constant index_map -> fetched once, VMEM-resident).
                pl.BlockSpec((C, C), lambda b: (0, 0)),           # band^T
                pl.BlockSpec((O, C), lambda b: (0, 0)),           # 1x1 conv weight
                pl.BlockSpec((O, 1), lambda b: (0, 0)),           # 1x1 conv bias
            ],
            out_specs=pl.BlockSpec((BT, O, HW), lambda b: (b, 0, 0)),
        ),
        compiler_params=pltpu.CompilerParams(
            dimension_semantics=("parallel",),
            vmem_limit_bytes=vmem_limit),
    )(x, band_t, w2, b_col)

    return out.reshape(B, O, H, W)


def ecanet_ref(x_nchw, w1d, w2, b2, *, k):
    """Pure-JAX reference matching the PyTorch module."""
    B, C, H, W = x_nchw.shape
    pad = (k - 1) // 2
    pooled = x_nchw.astype(jnp.float32).mean(axis=(2, 3))              # (B, C)
    pp = jnp.pad(pooled, ((0, 0), (pad, pad)))
    conv = jnp.zeros_like(pooled)
    for j in range(k):
        conv = conv + w1d[j].astype(jnp.float32) * pp[:, j:j + C]
    attn = jax.nn.sigmoid(conv)[:, :, None, None]
    y = x_nchw.astype(jnp.float32) * attn
    out = jnp.einsum("oc,bchw->bohw", w2.astype(jnp.float32), y) \
        + b2.astype(jnp.float32)[None, :, None, None]
    return out.astype(x_nchw.dtype)


if __name__ == "__main__":
    # Small shapes consistent with the module.
    B, C, O, H, W = 2, 8, 8, 16, 16
    gamma, b = 2, 1
    k = int(abs((math.log(C, 2) + b) / gamma))
    k = k if k % 2 else k + 1            # C=8 -> k=3

    key = jax.random.PRNGKey(0)
    kx, k1, k2, k3 = jax.random.split(key, 4)
    x = jax.random.normal(kx, (B, C, H, W), dtype=jnp.float32)
    w1d = jax.random.normal(k1, (k,), dtype=jnp.float32) * 0.5          # Conv1d(1,1,k) weight
    w2 = jax.random.normal(k2, (O, C), dtype=jnp.float32) * 0.1         # Conv2d 1x1 weight
    b2 = jax.random.normal(k3, (O,), dtype=jnp.float32) * 0.1           # Conv2d 1x1 bias

    # f32 check (tight tolerance).
    out = ecanet_pallas(x, w1d, w2, b2, k=k)
    jax.block_until_ready(out)
    ref = ecanet_ref(x, w1d, w2, b2, k=k)
    assert out.shape == (B, O, H, W) and out.dtype == x.dtype
    assert jnp.allclose(out, ref, atol=1e-4, rtol=1e-4), "f32 mismatch vs reference"

    # bf16 check (folded-weight path rounds the scaled weight once; compare loosely).
    xb = x.astype(jnp.bfloat16)
    w2b = w2.astype(jnp.bfloat16)
    b2b = b2.astype(jnp.bfloat16)
    out_b = ecanet_pallas(xb, w1d, w2b, b2b, k=k)
    jax.block_until_ready(out_b)
    ref_b = ecanet_ref(xb, w1d, w2b, b2b, k=k)
    assert out_b.shape == (B, O, H, W) and out_b.dtype == jnp.bfloat16
    assert jnp.allclose(out_b.astype(jnp.float32), ref_b.astype(jnp.float32),
                        atol=5e-2, rtol=5e-2), "bf16 mismatch vs reference"

    print("KERNEL_OK")
</pallas_src>

<mosaic_0001>
module attributes {stable_mosaic.version = 11 : i64} {
  func.func @_eca_kernel(%arg0: i32, %arg1: memref<1x8x256xf32, #tpu.memory_space<vmem>>, %arg2: memref<8x8xf32, #tpu.memory_space<vmem>>, %arg3: memref<8x8xf32, #tpu.memory_space<vmem>>, %arg4: memref<8x1xf32, #tpu.memory_space<vmem>>, %arg5: memref<1x8x256xf32, #tpu.memory_space<vmem>>) attributes {dimension_semantics = [#tpu.dimension_semantics<parallel>], iteration_bounds = array<i64: 2>, scalar_prefetch = 0 : i64, scratch_operands = 0 : i64, tpu.core_type = #tpu.core_type<tc>, window_params = [{transform_indices = @transform_0, window_bounds = array<i64: 1, 8, 256>}, {pipeline_mode = #tpu.pipeline_mode<synchronous>, transform_indices = @transform_1, window_bounds = array<i64: 8, 8>}, {pipeline_mode = #tpu.pipeline_mode<synchronous>, transform_indices = @transform_2, window_bounds = array<i64: 8, 8>}, {pipeline_mode = #tpu.pipeline_mode<synchronous>, transform_indices = @transform_3, window_bounds = array<i64: 8, 1>}, {transform_indices = @transform_4, window_bounds = array<i64: 1, 8, 256>}]} {
    %c0 = arith.constant 0 : index
    %c0_0 = arith.constant 0 : index
    %c0_1 = arith.constant 0 : index
    %0 = vector.load %arg1[%c0, %c0_0, %c0_1] : memref<1x8x256xf32, #tpu.memory_space<vmem>>, vector<1x8x256xf32>
    %cst = arith.constant dense<0.000000e+00> : vector<1x8xf32>
    %1 = vector.multi_reduction <add>, %0, %cst [2] : vector<1x8x256xf32> to vector<1x8xf32>
    %cst_2 = arith.constant 3.906250e-03 : f32
    %2 = vector.broadcast %cst_2 : f32 to vector<1x8xf32>
    %3 = arith.mulf %1, %2 : vector<1x8xf32>
    %c0_3 = arith.constant 0 : index
    %c0_4 = arith.constant 0 : index
    %4 = vector.load %arg2[%c0_3, %c0_4] : memref<8x8xf32, #tpu.memory_space<vmem>>, vector<8x8xf32>
    %cst_5 = arith.constant dense<0.000000e+00> : vector<1x8xf32>
    %5 = tpu.matmul %3, %4, %cst_5 {dimension_numbers = #tpu.dot_dimension_numbers<[1], [0], [0], [1], [0, 0, 1, 1], [], []>} : vector<1x8xf32>, vector<8x8xf32>, vector<1x8xf32> -> vector<1x8xf32>
    %6 = math.absf %5 : vector<1x8xf32>
    %cst_6 = arith.constant 0.000000e+00 : f32
    %7 = vector.broadcast %cst_6 : f32 to vector<1x8xf32>
    %8 = arith.subf %7, %6 : vector<1x8xf32>
    %9 = math.exp %8 : vector<1x8xf32>
    %cst_7 = arith.constant 0.000000e+00 : f32
    %10 = vector.broadcast %cst_7 : f32 to vector<1x8xf32>
    %11 = arith.cmpf oge, %5, %10 : vector<1x8xf32>
    %cst_8 = arith.constant 1.000000e+00 : f32
    %12 = vector.broadcast %cst_8 : f32 to vector<1x8xf32>
    %13 = arith.addf %12, %9 : vector<1x8xf32>
    %cst_9 = arith.constant 1.000000e+00 : f32
    %14 = vector.broadcast %cst_9 : f32 to vector<1x8xf32>
    %15 = arith.divf %14, %13 : vector<1x8xf32>
    %cst_10 = arith.constant 1.000000e+00 : f32
    %16 = vector.broadcast %cst_10 : f32 to vector<1x8xf32>
    %17 = arith.addf %16, %9 : vector<1x8xf32>
    %18 = arith.divf %9, %17 : vector<1x8xf32>
    %19 = arith.select %11, %15, %18 : vector<1x8xi1>, vector<1x8xf32>
    %c0_11 = arith.constant 0 : index
    %c0_12 = arith.constant 0 : index
    %20 = vector.load %arg3[%c0_11, %c0_12] : memref<8x8xf32, #tpu.memory_space<vmem>>, vector<8x8xf32>
    %c0_13 = arith.constant 0 : index
    %c0_14 = arith.constant 0 : index
    %21 = vector.load %arg4[%c0_13, %c0_14] : memref<8x1xf32, #tpu.memory_space<vmem>>, vector<8x1xf32>
    %22 = vector.broadcast %19 : vector<1x8xf32> to vector<8x8xf32>
    %23 = arith.mulf %20, %22 : vector<8x8xf32>
    %24 = vector.shape_cast %0 : vector<1x8x256xf32> to vector<8x256xf32>
    %cst_15 = arith.constant dense<0.000000e+00> : vector<8x256xf32>
    %25 = tpu.matmul %23, %24, %cst_15 {dimension_numbers = #tpu.dot_dimension_numbers<[1], [0], [0], [1], [0, 0, 1, 1], [], []>} : vector<8x8xf32>, vector<8x256xf32>, vector<8x256xf32> -> vector<8x256xf32>
    %26 = vector.broadcast %21 : vector<8x1xf32> to vector<8x256xf32>
    %27 = arith.addf %25, %26 : vector<8x256xf32>
    %c0_16 = arith.constant 0 : index
    %c0_17 = arith.constant 0 : index
    %c0_18 = arith.constant 0 : index
    %28 = vector.load %arg5[%c0_16, %c0_17, %c0_18] : memref<1x8x256xf32, #tpu.memory_space<vmem>>, vector<1x8x256xf32>
    %29 = vector.shape_cast %28 : vector<1x8x256xf32> to vector<8x256xf32>
    %30 = vector.shape_cast %27 : vector<8x256xf32> to vector<1x8x256xf32>
    tpu.vector_store %arg5[%c0_16, %c0_17, %c0_18], %30 {strides = array<i32>} : memref<1x8x256xf32, #tpu.memory_space<vmem>>, vector<1x8x256xf32>,
    return
  }
  func.func @transform_0(%arg0: i32) -> (i32, i32, i32) {
    %c0_i32 = arith.constant 0 : i32
    %c0_i32_0 = arith.constant 0 : i32
    %c0_i32_1 = arith.constant 0 : i32
    return %arg0, %c0_i32, %c0_i32_0 : i32, i32, i32
  }
  func.func @transform_1(%arg0: i32) -> (i32, i32) {
    %c0_i32 = arith.constant 0 : i32
    %c0_i32_0 = arith.constant 0 : i32
    %c0_i32_1 = arith.constant 0 : i32
    return %c0_i32, %c0_i32_0 : i32, i32
  }
  func.func @transform_2(%arg0: i32) -> (i32, i32) {
    %c0_i32 = arith.constant 0 : i32
    %c0_i32_0 = arith.constant 0 : i32
    %c0_i32_1 = arith.constant 0 : i32
    return %c0_i32, %c0_i32_0 : i32, i32
  }
  func.func @transform_3(%arg0: i32) -> (i32, i32) {
    %c0_i32 = arith.constant 0 : i32
    %c0_i32_0 = arith.constant 0 : i32
    %c0_i32_1 = arith.constant 0 : i32
    return %c0_i32, %c0_i32_0 : i32, i32
  }
  func.func @transform_4(%arg0: i32) -> (i32, i32, i32) {
    %c0_i32 = arith.constant 0 : i32
    %c0_i32_0 = arith.constant 0 : i32
    %c0_i32_1 = arith.constant 0 : i32
    return %arg0, %c0_i32, %c0_i32_0 : i32, i32, i32
  }
}

</mosaic_0001>

<llo_original>
// kernel: tpu_custom_call.1
$region0: #{tpu_custom_call.1}
  #allocation0 [shape = 'u32[]', space=smem, size = 0x4, offset = 0x4, fixed_abs, tag = 'smem constant byte address 0x4 - core index']
  #allocation1 [shape = 'u32[72,128]{1,0:T(1,128)}', space=vmem, size = 0x9000, scoped, tag = 'internal scratch']
  %s0 = inlined_call_operand.hbm [shape: f32[2,8,256], index: 0, kind: input, shape index: {}]
  %s1 = inlined_call_operand.vmem [shape: f32[8,8], index: 1, kind: input, shape index: {}]
  %s2 = inlined_call_operand.hbm [shape: f32[8,8], index: 2, kind: input, shape index: {}]
  %s3 = inlined_call_operand.vmem [shape: f32[8,1], index: 3, kind: input, shape index: {}]
  %s4 = inlined_call_operand.hbm [shape: f32[2,8,256], index: 4, kind: output, shape index: {}]
  %s5 = sld [smem:[#allocation0]]
  $region57: #{tpu_custom_call.1} parent=0
    _
  %s7 = ssub.s32 1, %s5
  %s8 = scalar_select 0, %s7, %s5
  $region1: #{tpu_custom_call.1} parent=0
    #allocation2 [shape = 'u8[16384]{0}', space=vmem, size = 0x4000, scoped, tag = 'input window, operand 0']
    #allocation3 [shape = 's32[2]{0}', space=sflag, size = 0x8, scoped, tag = 'scoped memory for tpu_custom_call.1']
    #allocation4 [shape = 's32[2]{0}', space=sflag, size = 0x8, scoped, tag = 'scoped memory for tpu_custom_call.1']
    #allocation5 [shape = 'u8[4096]{0}', space=vmem, size = 0x1000, scoped, tag = 'input window, operand 2, single buffered']
    #allocation6 [shape = 's32[1]{0}', space=sflag, size = 0x4, scoped, tag = 'scoped memory for tpu_custom_call.1']
    #allocation7 [shape = 'u8[16384]{0}', space=vmem, size = 0x4000, scoped, tag = 'output window, operand 0']
    %9 = vsyncpa [#allocation3], 0
    %s10 = scalar_lea.sflag [#allocation3], 1
    %11 = vsyncpa %s10, 0
    %12 = vsyncpa [#allocation6], 0
    %13 = vsyncpa [#allocation4], 0
    %s14 = scalar_lea.sflag [#allocation4], 1
    %15 = vsyncpa %s14, 0
    loop: start=0, step=1, limit=4
    $region2: #{tpu_custom_call.1} parent=1 // loop_pre_header
      _
    $region3: #{tpu_custom_call.1} parent=1 // loop_header
      %s17 = sphi 0, %s21
      %p18 = scmp.ge.s32.totalorder %s17, 4
      %s27 = sphi 0, %s29
      %s30 = sphi 0, %s27
      %s31 = sphi 0, %s30
      %s47 = sphi 0, %s31
      %s51 = sphi 0, %s51
      %s53 = sphi 0, %s51
      %s54 = sphi 0, %s53
      %s68 = sphi 0, %s54
      %s72 = sphi 0, %s72
      %s74 = sphi 0, %s72
      %s75 = sphi 0, %s74
      %s89 = sphi 0, %s75
      %s93 = sphi 0, %s93
      %s95 = sphi 0, %s93
      %s96 = sphi 0, %s95
      %s110 = sphi 0, %s96
      %s116 = sphi 0, %s118
      %s119 = sphi 0, %s116
      %s120 = sphi 0, %s119
      %s136 = sphi 0, %s120
    $region4: #{tpu_custom_call.1} parent=1 // loop_header_branch
      %20 = sbr.rel (%p18) target = $region8
    $region5: #{tpu_custom_call.1} parent=1 // loop_body
      %s22 = ssub.s32 %s17, 1
      %s23 = ssub.s32 %s17, 2
      %s24 = sadd.s32 %s17, 1
      %s25 = ssub.s32 %s17, %s24
      %p26 = scmp.eq.s32.totalorder %s25, 0
      %s28 = sadd.s32 %s27, 1
      %s29 = scalar_select %p26, %s27, %s28
      %p32 = pneg %p26
      %p33 = scmp.eq.s32.totalorder %s17, 1
      %p34 = por %p32, %p33
      %p35 = scmp.ne.s32.totalorder %s27, %s30
      %p36 = scmp.eq.s32.totalorder %s17, 0
      %p37 = por %p35, %p36
      %p38 = scmp.ne.s32.totalorder %s27, %s30
      %p39 = scmp.eq.s32.totalorder %s22, 1
      %p40 = por %p38, %p39
      %p41 = scmp.ne.s32.totalorder %s30, %s31
      %p42 = scmp.eq.s32.totalorder %s22, 0
      %p43 = por %p41, %p42
      %p44 = scmp.ne.s32.totalorder %s30, %s31
      %p45 = scmp.eq.s32.totalorder %s23, 1
      %p46 = por %p44, %p45
      %p48 = scmp.ne.s32.totalorder %s31, %s47
      %p49 = scmp.eq.s32.totalorder %s23, 0
      %p50 = por %p48, %p49
      %s52 = sadd.s32 %s51, 1
      %p55 = scmp.eq.s32.totalorder %s17, 1
      %p56 = scmp.ne.s32.totalorder %s51, %s53
      %p57 = scmp.eq.s32.totalorder %s17, 0
      %p58 = por %p56, %p57
      %p59 = scmp.ne.s32.totalorder %s51, %s53
      %p60 = scmp.eq.s32.totalorder %s22, 1
      %p61 = por %p59, %p60
      %p62 = scmp.ne.s32.totalorder %s53, %s54
      %p63 = scmp.eq.s32.totalorder %s22, 0
      %p64 = por %p62, %p63
      %p65 = scmp.ne.s32.totalorder %s53, %s54
      %p66 = scmp.eq.s32.totalorder %s23, 1
      %p67 = por %p65, %p66
      %p69 = scmp.ne.s32.totalorder %s54, %s68
      %p70 = scmp.eq.s32.totalorder %s23, 0
      %p71 = por %p69, %p70
      %s73 = sadd.s32 %s72, 1
      %p76 = scmp.eq.s32.totalorder %s17, 1
      %p77 = scmp.ne.s32.totalorder %s72, %s74
      %p78 = scmp.eq.s32.totalorder %s17, 0
      %p79 = por %p77, %p78
      %p80 = scmp.ne.s32.totalorder %s72, %s74
      %p81 = scmp.eq.s32.totalorder %s22, 1
      %p82 = por %p80, %p81
      %p83 = scmp.ne.s32.totalorder %s74, %s75
      %p84 = scmp.eq.s32.totalorder %s22, 0
      %p85 = por %p83, %p84
      %p86 = scmp.ne.s32.totalorder %s74, %s75
      %p87 = scmp.eq.s32.totalorder %s23, 1
      %p88 = por %p86, %p87
      %p90 = scmp.ne.s32.totalorder %s75, %s89
      %p91 = scmp.eq.s32.totalorder %s23, 0
      %p92 = por %p90, %p91
      %s94 = sadd.s32 %s93, 1
      %p97 = scmp.eq.s32.totalorder %s17, 1
      %p98 = scmp.ne.s32.totalorder %s93, %s95
      %p99 = scmp.eq.s32.totalorder %s17, 0
      %p100 = por %p98, %p99
      %p101 = scmp.ne.s32.totalorder %s93, %s95
      %p102 = scmp.eq.s32.totalorder %s22, 1
      %p103 = por %p101, %p102
      %p104 = scmp.ne.s32.totalorder %s95, %s96
      %p105 = scmp.eq.s32.totalorder %s22, 0
      %p106 = por %p104, %p105
      %p107 = scmp.ne.s32.totalorder %s95, %s96
      %p108 = scmp.eq.s32.totalorder %s23, 1
      %p109 = por %p107, %p108
      %p111 = scmp.ne.s32.totalorder %s96, %s110
      %p112 = scmp.eq.s32.totalorder %s23, 0
      %p113 = por %p111, %p112
      %s114 = ssub.s32 %s17, %s24
      %p115 = scmp.eq.s32.totalorder %s114, 0
      %s117 = sadd.s32 %s116, 1
      %s118 = scalar_select %p115, %s116, %s117
      %p121 = pneg %p115
      %p122 = scmp.eq.s32.totalorder %s17, 1
      %p123 = por %p121, %p122
      %p124 = scmp.ne.s32.totalorder %s116, %s119
      %p125 = scmp.eq.s32.totalorder %s17, 0
      %p126 = por %p124, %p125
      %p127 = scmp.ne.s32.totalorder %s116, %s119
      %p128 = scmp.eq.s32.totalorder %s22, 1
      %p129 = por %p127, %p128
      %p130 = scmp.ne.s32.totalorder %s119, %s120
      %p131 = scmp.eq.s32.totalorder %s22, 0
      %p132 = por %p130, %p131
      %p133 = scmp.ne.s32.totalorder %s119, %s120
      %p134 = scmp.eq.s32.totalorder %s23, 1
      %p135 = por %p133, %p134
      %p137 = scmp.ne.s32.totalorder %s120, %s136
      %p138 = scmp.eq.s32.totalorder %s23, 0
      %p139 = por %p137, %p138
      %p140 = scmp.le.s32.totalorder 1, %s17
      %p141 = scmp.lt.s32.totalorder %s17, 3
      %p142 = pnand %p140, %p141
      %p143 = pneg %p142
      // Predicated region
      $region9: #{tpu_custom_call.1} parent=5 // pred_check
        _
      $region10: #{tpu_custom_call.1} parent=5 // pred_check_branch
        %145 = sbr.rel (%p142) target = $region12
      $region11: #{tpu_custom_call.1} parent=5 // pred_region
        %s146 = ssub.s32 %s17, 1
        // Predicated region
        $region13: #{tpu_custom_call.1} parent=11 // pred_check
          %p147 = pneg %p64
        $region14: #{tpu_custom_call.1} parent=11 // pred_check_branch
          %149 = sbr.rel (%p147) target = $region16
        $region15: #{tpu_custom_call.1} parent=11 // pred_region
          _
        $region16: #{tpu_custom_call.1} parent=11 // pred_fallthru
          _
        // Predicated region
        $region17: #{tpu_custom_call.1} parent=11 // pred_check
          %p150 = pneg %p85
        $region18: #{tpu_custom_call.1} parent=11 // pred_check_branch
          %152 = sbr.rel (%p150) target = $region20
        $region19: #{tpu_custom_call.1} parent=11 // pred_region
          %154 = vsyncadd [#allocation6], 0
          %s156 = sshll.u32 %s2, 4
          %s157 = int_to_ptr.hbm [resolvable:$true] %s156
          %s158 = sshll.u32 [#allocation5], 4
          %s159 = int_to_ptr.vmem [resolvable:$true] %s158
          %161 = dma.hbm_to_vmem [thread:$0]  %s157, 128, %s159, [#allocation6]
        $region20: #{tpu_custom_call.1} parent=11 // pred_fallthru
          _
        // Predicated region
        $region21: #{tpu_custom_call.1} parent=11 // pred_check
          %p162 = pneg %p106
        $region22: #{tpu_custom_call.1} parent=11 // pred_check_branch
          %164 = sbr.rel (%p162) target = $region24
        $region23: #{tpu_custom_call.1} parent=11 // pred_region
          _
        $region24: #{tpu_custom_call.1} parent=11 // pred_fallthru
          _
      $region12: #{tpu_custom_call.1} parent=5 // pred_fallthru
        _
      %p165 = scmp.lt.s32.totalorder %s17, 2
      // Predicated region
      $region25: #{tpu_custom_call.1} parent=5 // pred_check
        %p166 = pneg %p165
      $region26: #{tpu_custom_call.1} parent=5 // pred_check_branch
        %168 = sbr.rel (%p166) target = $region28
      $region27: #{tpu_custom_call.1} parent=5 // pred_region
        // Predicated region
        $region29: #{tpu_custom_call.1} parent=27 // pred_check
          %p169 = pneg %p37
        $region30: #{tpu_custom_call.1} parent=27 // pred_check_branch
          %171 = sbr.rel (%p169) target = $region32
        $region31: #{tpu_custom_call.1} parent=27 // pred_region
          %s172 = sand.u32 %s27, 1
          %s173 = scalar_lea.sflag [#allocation3], %s172
          %s174 = sand.u32 %s27, 1
          %s175 = smul.addr %s174, 16
          %s176 = scalar_lea.vmem [#allocation2], %s175
          %178 = vsyncadd %s173, 0
          %s179 = smul.addr %s17, 2
          %s180 = smul.addr %s179, 8
          %s181 = scalar_lea.hbm %s0, %s180
          %s183 = sshll.u32 %s181, 4
          %s184 = int_to_ptr.hbm [resolvable:$true] %s183
          %s185 = sshll.u32 %s176, 4
          %s186 = int_to_ptr.vmem [resolvable:$true] %s185
          %188 = dma.hbm_to_vmem [thread:$0]  %s184, 256, %s186, %s173
        $region32: #{tpu_custom_call.1} parent=27 // pred_fallthru
          _
      $region28: #{tpu_custom_call.1} parent=5 // pred_fallthru
        _
      %p189 = scmp.le.s32.totalorder 1, %s17
      %p190 = scmp.lt.s32.totalorder %s17, 3
      %p191 = pnand %p189, %p190
      %p192 = pneg %p191
      // Predicated region
      $region33: #{tpu_custom_call.1} parent=5 // pred_check
        _
      $region34: #{tpu_custom_call.1} parent=5 // pred_check_branch
        %194 = sbr.rel (%p191) target = $region36
      $region35: #{tpu_custom_call.1} parent=5 // pred_region
        %s195 = ssub.s32 %s17, 1
        %s196 = sand.u32 %s30, 1
        %s197 = scalar_lea.sflag [#allocation3], %s196
        %s198 = sand.u32 %s30, 1
        %s199 = smul.addr %s198, 16
        %s200 = scalar_lea.vmem [#allocation2], %s199
        // Predicated region
        $region37: #{tpu_custom_call.1} parent=35 // pred_check
          %p201 = pneg %p43
        $region38: #{tpu_custom_call.1} parent=35 // pred_check_branch
          %203 = sbr.rel (%p201) target = $region40
        $region39: #{tpu_custom_call.1} parent=35 // pred_region
          %205 = dma.done %s197, 256
        $region40: #{tpu_custom_call.1} parent=35 // pred_fallthru
          _
        // Predicated region
        $region41: #{tpu_custom_call.1} parent=35 // pred_check
          %p206 = pneg %p85
        $region42: #{tpu_custom_call.1} parent=35 // pred_check_branch
          %208 = sbr.rel (%p206) target = $region44
        $region43: #{tpu_custom_call.1} parent=35 // pred_region
          %210 = dma.done [#allocation6], 128
        $region44: #{tpu_custom_call.1} parent=35 // pred_fallthru
          _
        %s211 = sand.u32 %s30, 1
        %s212 = scalar_lea.sflag [#allocation3], %s211
        %s213 = sand.u32 %s30, 1
        %s214 = smul.addr %s213, 16
        %s215 = scalar_lea.vmem [#allocation2], %s214
        %p216 = pneg %p43
        %p217 = pneg %p40
        %p218 = pneg %p64
        %p219 = pneg %p61
        %p220 = pneg %p85
        %p221 = pneg %p82
        %p222 = pneg %p106
        %p223 = pneg %p103
        %p224 = pneg %p132
        %p225 = pneg %p129
        %s226 = sand.u32 %s119, 1
        %s227 = scalar_lea.sflag [#allocation4], %s226
        %s228 = sand.u32 %s119, 1
        %s229 = smul.addr %s228, 16
        %s230 = scalar_lea.vmem [#allocation7], %s229
        %v231 = vld [vmem:[%s200] sm:$0xff]
        %v232 = vld [vmem:[%s200 + $0x8] sm:$0xff]
        %v233 = vadd.f32 %v231, %v232
        %234 = vadd.xlane.f32.xlu0 %v233
        %v235 = vpop.xlane.xlu0 %234
        %v236 = vmul.f32 %v235, 0.00390625
        %v237 = vld [vmem:[%s1] sm:$0xff]
        %v239 = vlaneseq
        %v240 = vand.u32 %v239, 127
        %v241 = vperm.slane %v236, %v240
        %vm242 = vcmask 64512
        %v243 = vsel %vm242, %v241, 0
        %245 = vmatpush.msra.mxu0 0.0
        %246 = vmatpush.msra.mxu0 0.0
        %247 = vmatpush.msra.mxu0 0.0
        %248 = vmatpush.msra.mxu0 0.0
        %249 = vmatpush.msra.mxu0 0.0
        %250 = vmatpush.msra.mxu0 0.0
        %251 = vmatpush.msra.mxu0 0.0
        %252 = vmatpush.msra.mxu0 0.0
        %253 = vmatpush.msra.mxu0 0.0
        %254 = vmatpush.msra.mxu0 0.0
        %255 = vmatpush.msra.mxu0 0.0
        %256 = vmatpush.msra.mxu0 0.0
        %257 = vmatpush.msra.mxu0 0.0
        %258 = vmatpush.msra.mxu0 0.0
        %259 = vmatpush.msra.mxu0 0.0
        %260 = vmatpush.msra.mxu0 %v237
        %261 = vmatmul.f32.gmra.mxu0 %v243
        %v262 = vpop.f32.mrf.mxu0
        %v263 = vadd.f32 0.0, %v262
        %264 = vdwg.mxu0
        %v265 = vand.u32 2147483647, %v263
        %v266 = vsub.f32 0.0, %v265
        %v267 = vmul.f32 %v266, 1.442695
        %v268 = vpow.pop %v267
        %vm269 = vcmp.ge.f32.partialorder %v263, 0.0
        %v270 = vadd.f32 %v268, 1.0
        %v271 = vrcp.pop %v270
        %v272 = vmul.f32 %v270, %v271
        %v273 = vsub.f32 1.0, %v272
        %v274 = vmul.f32 %v271, %v273
        %v275 = vadd.f32 %v271, %v274
        %vm276 = vweird.f32 %v270
        %vm277 = vweird.f32 %v271
        %vm278 = vmor %vm276, %vm277
        %v279 = vsel %vm278, %v271, %v275
        %v280 = vand.u32 2147483647, %v270
        %vm281 = vcmp.eq.f32.partialorder %v280, 8.507059e+37
        %v282 = vand.u32 %v270, 2147483648
        %v283 = vor.u32 1.1754944e-38, %v282
        %v284 = vsel %vm281, %v283, %v279
        %v285 = vmul.f32 1.0, %v284
        %v286 = vmul.f32 %v268, %v284
        %v287 = vsel %vm269, %v285, %v286
        %v288 = vld [vmem:[#allocation5] sm:$0xff]
        %v289 = vld [vmem:[%s3] sm:$0xff]
        %v290 = vperm.slane %v287, 0
        %v291 = vmul.f32 %v288, %v290
        %293 = vset.pattern.permute.xlu0 0
        %294 = vperm.xlu0 %293, %v289
        %v295 = vpop.permute.xlu0 %294
        %v298 = vsel %vm242, %v291, 0
        %300 = vmatpush.msra.mxu0 0.0
        %301 = vmatpush.msra.mxu0 0.0
        %302 = vmatpush.msra.mxu0 0.0
        %303 = vmatpush.msra.mxu0 0.0
        %304 = vmatpush.msra.mxu0 0.0
        %305 = vmatpush.msra.mxu0 0.0
        %306 = vmatpush.msra.mxu0 0.0
        %307 = vmatpush.msra.mxu0 0.0
        %308 = vmatpush.msra.mxu0 0.0
        %309 = vmatpush.msra.mxu0 0.0
        %310 = vmatpush.msra.mxu0 0.0
        %311 = vmatpush.msra.mxu0 0.0
        %312 = vmatpush.msra.mxu0 0.0
        %313 = vmatpush.msra.mxu0 0.0
        %314 = vmatpush.msra.mxu0 0.0
        %315 = vmatpush.msra.mxu0 %v231
        %316 = vmatmul.f32.gmra.mxu0 %v298
        %v317 = vpop.f32.mrf.mxu0
        %v318 = vadd.f32 %v295, %v317
        %319 = vdwg.mxu0
        %320 = vmatpush.msra.mxu0 0.0
        %321 = vmatpush.msra.mxu0 0.0
        %322 = vmatpush.msra.mxu0 0.0
        %323 = vmatpush.msra.mxu0 0.0
        %324 = vmatpush.msra.mxu0 0.0
        %325 = vmatpush.msra.mxu0 0.0
        %326 = vmatpush.msra.mxu0 0.0
        %327 = vmatpush.msra.mxu0 0.0
        %328 = vmatpush.msra.mxu0 0.0
        %329 = vmatpush.msra.mxu0 0.0
        %330 = vmatpush.msra.mxu0 0.0
        %331 = vmatpush.msra.mxu0 0.0
        %332 = vmatpush.msra.mxu0 0.0
        %333 = vmatpush.msra.mxu0 0.0
        %334 = vmatpush.msra.mxu0 0.0
        %335 = vmatpush.msra.mxu0 %v232
        %336 = vmatmul.f32.gmra.mxu0 %v298
        %v337 = vpop.f32.mrf.mxu0
        %v338 = vadd.f32 %v295, %v337
        %339 = vdwg.mxu0
        %340 = vst [vmem:[%s230] sm:$0xff] %v318
        %341 = vst [vmem:[%s230 + $0x8] sm:$0xff] %v338
        %s342 = sand.u32 %s119, 1
        %s343 = scalar_lea.sflag [#allocation4], %s342
        %s344 = sand.u32 %s119, 1
        %s345 = smul.addr %s344, 16
        %s346 = scalar_lea.vmem [#allocation7], %s345
        // Predicated region
        $region45: #{tpu_custom_call.1} parent=35 // pred_check
          %p347 = pneg %p129
        $region46: #{tpu_custom_call.1} parent=35 // pred_check_branch
          %349 = sbr.rel (%p347) target = $region48
        $region47: #{tpu_custom_call.1} parent=35 // pred_region
          %351 = vsyncadd %s343, 0
          %s352 = smul.addr %s22, 2
          %s353 = smul.addr %s352, 8
          %s354 = scalar_lea.hbm %s4, %s353
          %s356 = sshll.u32 %s346, 4
          %s357 = int_to_ptr.vmem [resolvable:$true] %s356
          %s358 = sshll.u32 %s354, 4
          %s359 = int_to_ptr.hbm [resolvable:$true] %s358
          %361 = dma.vmem_to_hbm [thread:$0]  %s357, 256, %s359, %s343
        $region48: #{tpu_custom_call.1} parent=35 // pred_fallthru
          _
      $region36: #{tpu_custom_call.1} parent=5 // pred_fallthru
        _
      %p362 = scmp.le.s32.totalorder 2, %s17
      // Predicated region
      $region49: #{tpu_custom_call.1} parent=5 // pred_check
        %p363 = pneg %p362
      $region50: #{tpu_custom_call.1} parent=5 // pred_check_branch
        %365 = sbr.rel (%p363) target = $region52
      $region51: #{tpu_custom_call.1} parent=5 // pred_region
        %s366 = ssub.s32 %s17, 2
        // Predicated region
        $region53: #{tpu_custom_call.1} parent=51 // pred_check
          %p367 = pneg %p135
        $region54: #{tpu_custom_call.1} parent=51 // pred_check_branch
          %369 = sbr.rel (%p367) target = $region56
        $region55: #{tpu_custom_call.1} parent=51 // pred_region
          %s370 = sand.u32 %s120, 1
          %s371 = scalar_lea.sflag [#allocation4], %s370
          %s372 = sand.u32 %s120, 1
          %s373 = smul.addr %s372, 16
          %s374 = scalar_lea.vmem [#allocation7], %s373
          %376 = dma.done %s371, 256
        $region56: #{tpu_custom_call.1} parent=51 // pred_fallthru
          _
      $region52: #{tpu_custom_call.1} parent=5 // pred_fallthru
        _
    $region6: #{tpu_custom_call.1} parent=1 // loop_footer
      %s21 = sadd.s32 1, %s17
    $region7: #{tpu_custom_call.1} parent=1 // loop_footer_branch
      %16 = sbr.rel target = $region3
    $region8: #{tpu_custom_call.1} parent=1 // loop_exit
      _
    %377 = vsyncpa [#allocation3], 1
    %s378 = scalar_lea.sflag [#allocation3], 1
    %379 = vsyncpa %s378, 1
    %380 = vsyncpa [#allocation6], 1
    %381 = vsyncpa [#allocation4], 1
    %s382 = scalar_lea.sflag [#allocation4], 1
    %383 = vsyncpa %s382, 1

</llo_original>
